<compile_context>
chip_gen: v7x
topology: tpu7x:2x2x1
jax: 0.10.0
libtpu: 0.0.40
codegen_flags: <defaults>
</compile_context>

<pallas_src>
import functools

import jax
import jax.numpy as jnp
from jax.experimental import pallas as pl
from jax.experimental.pallas import tpu as pltpu

BN_EPS = 1e-5
_TM_CAP = 2048                    # max rows per grid step for the flat / BN-apply kernels

_VMEM_LIMIT_CACHE = None


def _vmem_limit():
    """Generation-aware VMEM cap: ~75% of physical (48 MiB on v7x, 96 MiB on v5e/v6e)."""
    global _VMEM_LIMIT_CACHE
    if _VMEM_LIMIT_CACHE is None:
        try:
            cap = pltpu.get_tpu_info().vmem_capacity_bytes
            _VMEM_LIMIT_CACHE = max(32 << 20, min(int(cap * 3 // 4), 100 << 20))
        except Exception:
            _VMEM_LIMIT_CACHE = 48 << 20
    return _VMEM_LIMIT_CACHE


def _round_up(x, m):
    return (x + m - 1) // m * m


def _pick_tm(m, cap=_TM_CAP):
    """Largest row tile <= cap that divides m and is a multiple of 8 (or m itself)."""
    if m <= cap:
        return m
    t = (cap // 8) * 8
    while t >= 8:
        if m % t == 0:
            return t
        t -= 8
    return m            # fallback: single block (never hit for this network's shapes)


# ----------------------------------------------------------------------------------
# ConvBlock kernels
# ----------------------------------------------------------------------------------
def _conv_flat_kernel(p_ref, w_ref, y_ref, st_ref, *, coutp):
    """1x1 conv: y = x @ w (bf16 MXU, f32 acc); per-tile channel sum / sum-of-squares."""
    y = jnp.dot(p_ref[...], w_ref[...], preferred_element_type=jnp.float32)
    y_ref[...] = y.astype(y_ref.dtype)
    s1 = jnp.sum(y, axis=0, keepdims=True)
    s2 = jnp.sum(y * y, axis=0, keepdims=True)
    row = jax.lax.broadcasted_iota(jnp.int32, (8, coutp), 0)
    st_ref[...] = jnp.where(row == 0, s1, jnp.where(row == 1, s2, 0.0))


def _conv_row_kernel(x_ref, w_ref, y_ref, st_ref, acc_ref, *, kh, kw, ow, n, cin, coutp):
    """KxK conv with fused im2col.

    grid = (OH, kh); per step: read one padded input row per image (N,1,Wp,Cin),
    unroll the kw taps as static slices, accumulate the tap matmuls into a resident
    f32 accumulator, and on the last tap write y (bf16) plus per-output-row channel
    statistics.
    """
    di = pl.program_id(1)

    @pl.when(di == 0)
    def _init():
        acc_ref[...] = jnp.zeros_like(acc_ref)

    wp = x_ref.shape[2]
    xrow = x_ref[...].reshape(n, wp, cin)                      # (N, Wp, Cin), bf16
    part = jnp.zeros((n * ow, coutp), jnp.float32)
    for dj in range(kw):                                       # static unroll over kw taps
        patch = xrow[:, dj:dj + ow, :].reshape(n * ow, cin)
        wsl = w_ref[0, dj * cin:(dj + 1) * cin, :]
        part = part + jnp.dot(patch, wsl, preferred_element_type=jnp.float32)
    acc_ref[...] += part

    @pl.when(di == kh - 1)
    def _finish():
        y = acc_ref[...]                                       # (N*OW, Coutp) f32
        y_ref[...] = y.reshape(n, 1, ow, coutp).astype(y_ref.dtype)
        s1 = jnp.sum(y, axis=0, keepdims=True)
        s2 = jnp.sum(y * y, axis=0, keepdims=True)
        row = jax.lax.broadcasted_iota(jnp.int32, (8, coutp), 0)
        st_ref[...] = jnp.where(row == 0, s1, jnp.where(row == 1, s2, 0.0))


def _bn_apply_kernel(y_ref, scale_ref, bias_ref, o_ref, *, relu):
    """Pass 2: out = y*scale + bias (folded BN affine, f32 math), optional ReLU, bf16 store."""
    out = y_ref[...].astype(jnp.float32) * scale_ref[...] + bias_ref[...]
    if relu:
        out = jnp.maximum(out, 0.0)
    o_ref[...] = out.astype(o_ref.dtype)


def conv_bn_act(x_nhwc, weight_oihw, gamma, beta, *, padding=0, relu=False):
    """ConvBlock forward (Conv2d bias=False + BatchNorm2d batch stats [+ ReLU]) in NHWC (bf16)."""
    n, h, w, cin = x_nhwc.shape
    cout, cin_w, kh, kw = weight_oihw.shape
    assert cin_w == cin and kh == kw
    k = kh
    oh = h + 2 * padding - k + 1
    ow = w + 2 * padding - k + 1
    m = n * oh * ow
    coutp = _round_up(cout, 8)             # all cout in this net are already multiples of 8
    vmem = _vmem_limit()

    x_bf = x_nhwc if x_nhwc.dtype == jnp.bfloat16 else x_nhwc.astype(jnp.bfloat16)

    if k == 1:
        assert padding == 0
        patches = x_bf.reshape(m, cin)                         # free reshape, no copies
        w_mat = jnp.pad(jnp.transpose(weight_oihw[:, :, 0, 0]).astype(jnp.bfloat16),
                        ((0, 0), (0, coutp - cout)))
        tm = _pick_tm(m)
        n_tiles = m // tm
        y, stats = pl.pallas_call(
            functools.partial(_conv_flat_kernel, coutp=coutp),
            out_shape=(jax.ShapeDtypeStruct((m, coutp), jnp.bfloat16),
                       jax.ShapeDtypeStruct((n_tiles * 8, coutp), jnp.float32)),
            grid=(n_tiles,),
            in_specs=[pl.BlockSpec((tm, cin), lambda i: (i, 0)),
                      pl.BlockSpec((cin, coutp), lambda i: (0, 0))],
            out_specs=(pl.BlockSpec((tm, coutp), lambda i: (i, 0)),
                       pl.BlockSpec((8, coutp), lambda i: (i, 0))),
            compiler_params=pltpu.CompilerParams(
                dimension_semantics=("parallel",), vmem_limit_bytes=vmem),
        )(patches, w_mat)
        y2d = y
        n_stat = n_tiles
    else:
        xp = jnp.pad(x_bf, ((0, 0), (padding, padding), (padding, padding), (0, 0)))
        hp, wp = xp.shape[1], xp.shape[2]
        assert oh + k - 1 == hp and ow + k - 1 == wp
        # weights: (Cout,Cin,kh,kw) -> (kh, kw*Cin, Coutp); rows ordered (dj, ci)
        w_rows = jnp.transpose(weight_oihw, (2, 3, 1, 0)).reshape(kh, kw * cin, cout)
        w_rows = jnp.pad(w_rows.astype(jnp.bfloat16), ((0, 0), (0, 0), (0, coutp - cout)))
        y, stats = pl.pallas_call(
            functools.partial(_conv_row_kernel, kh=kh, kw=kw, ow=ow, n=n,
                              cin=cin, coutp=coutp),
            out_shape=(jax.ShapeDtypeStruct((n, oh, ow, coutp), jnp.bfloat16),
                       jax.ShapeDtypeStruct((oh * 8, coutp), jnp.float32)),
            grid=(oh, kh),
            in_specs=[pl.BlockSpec((n, 1, wp, cin), lambda i, d: (0, i + d, 0, 0)),
                      pl.BlockSpec((1, kw * cin, coutp), lambda i, d: (d, 0, 0))],
            out_specs=(pl.BlockSpec((n, 1, ow, coutp), lambda i, d: (0, i, 0, 0)),
                       pl.BlockSpec((8, coutp), lambda i, d: (i, 0))),
            scratch_shapes=[pltpu.VMEM((n * ow, coutp), jnp.float32)],
            compiler_params=pltpu.CompilerParams(
                dimension_semantics=("parallel", "arbitrary"), vmem_limit_bytes=vmem),
        )(xp, w_rows)
        y2d = y.reshape(m, coutp)                              # contiguous -> free reshape
        n_stat = oh

    # ---- fold BN (training-mode batch stats, biased variance) into scale/bias ------
    st = stats.reshape(n_stat, 8, coutp)
    s1 = jnp.sum(st[:, 0, :], axis=0)
    s2 = jnp.sum(st[:, 1, :], axis=0)
    mean = s1 / m
    var = jnp.maximum(s2 / m - mean * mean, 0.0)
    inv_std = jax.lax.rsqrt(var + BN_EPS)
    gamma_p = jnp.pad(gamma.astype(jnp.float32), (0, coutp - cout))
    beta_p = jnp.pad(beta.astype(jnp.float32), (0, coutp - cout))
    scale = (gamma_p * inv_std).reshape(1, coutp)
    bias = (beta_p - mean * gamma_p * inv_std).reshape(1, coutp)

    # ---- pass 2: y*scale + bias (+ReLU), bf16 in/out, parallel over M tiles ---------
    tm2 = _pick_tm(m)
    out = pl.pallas_call(
        functools.partial(_bn_apply_kernel, relu=relu),
        out_shape=jax.ShapeDtypeStruct((m, coutp), jnp.bfloat16),
        grid=(m // tm2,),
        in_specs=[pl.BlockSpec((tm2, coutp), lambda i: (i, 0)),
                  pl.BlockSpec((1, coutp), lambda i: (0, 0)),
                  pl.BlockSpec((1, coutp), lambda i: (0, 0))],
        out_specs=pl.BlockSpec((tm2, coutp), lambda i: (i, 0)),
        compiler_params=pltpu.CompilerParams(
            dimension_semantics=("parallel",), vmem_limit_bytes=vmem),
    )(y2d, scale, bias)

    out = out.reshape(n, oh, ow, coutp)
    if coutp != cout:
        out = out[..., :cout]
    return out


# ----------------------------------------------------------------------------------
# SE block kernel (fc1 -> ReLU -> fc2 -> sigmoid on the pooled channel vector)
# ----------------------------------------------------------------------------------
def _se_kernel(p_ref, w1_ref, w2_ref, o_ref):
    h = jnp.dot(p_ref[...], w1_ref[...], preferred_element_type=jnp.float32)
    h = jnp.maximum(h, 0.0).astype(jnp.bfloat16)
    s = jnp.dot(h, w2_ref[...], preferred_element_type=jnp.float32)
    o_ref[...] = jax.nn.sigmoid(s)


def se_block(x, p):
    n, _, _, c = x.shape
    pooled = jnp.mean(x, axis=(1, 2), dtype=jnp.float32)       # AdaptiveAvgPool2d(1)
    w1_t = jnp.transpose(p["w1"])                              # (c, hidden)
    w2_t = jnp.transpose(p["w2"])                              # (hidden, c)
    hid = w1_t.shape[1]
    cp = _round_up(c, 128)
    hp = _round_up(hid, 128)
    nr = _round_up(max(n, 8), 8)
    p_pad = jnp.pad(pooled, ((0, nr - n), (0, cp - c))).astype(jnp.bfloat16)
    w1p = jnp.pad(w1_t.astype(jnp.bfloat16), ((0, cp - c), (0, hp - hid)))
    w2p = jnp.pad(w2_t.astype(jnp.bfloat16), ((0, hp - hid), (0, cp - c)))
    s = pl.pallas_call(
        _se_kernel,
        out_shape=jax.ShapeDtypeStruct((nr, cp), jnp.float32),
        compiler_params=pltpu.CompilerParams(vmem_limit_bytes=_vmem_limit()),
    )(p_pad, w1p, w2p)[:n, :c]
    return x * s[:, None, None, :].astype(x.dtype)


# ----------------------------------------------------------------------------------
# Final Linear + softmax kernel
# ----------------------------------------------------------------------------------
def _fc_softmax_kernel(x_ref, w_ref, b_ref, logits_ref, probas_ref, *, num_classes):
    logits = jnp.dot(x_ref[...], w_ref[...], preferred_element_type=jnp.float32) + b_ref[...]
    logits_ref[...] = logits
    col = jax.lax.broadcasted_iota(jnp.int32, logits.shape, 1)
    valid = col < num_classes
    masked = jnp.where(valid, logits, -1e30)                   # mask lane padding
    mx = jnp.max(masked, axis=-1, keepdims=True)
    e = jnp.where(valid, jnp.exp(masked - mx), 0.0)
    probas_ref[...] = e / jnp.sum(e, axis=-1, keepdims=True)


def fc_softmax(flat, w, b):
    n, f_dim = flat.shape
    num_classes = w.shape[0]
    fp = _round_up(f_dim, 128)
    cp = _round_up(num_classes, 128)
    nr = _round_up(max(n, 8), 8)
    x_p = jnp.pad(flat.astype(jnp.bfloat16), ((0, nr - n), (0, fp - f_dim)))
    w_p = jnp.pad(jnp.transpose(w).astype(jnp.bfloat16),
                  ((0, fp - f_dim), (0, cp - num_classes)))
    b_p = jnp.pad(b.astype(jnp.float32), (0, cp - num_classes)).reshape(1, cp)
    logits_p, probas_p = pl.pallas_call(
        functools.partial(_fc_softmax_kernel, num_classes=num_classes),
        out_shape=(jax.ShapeDtypeStruct((nr, cp), jnp.float32),
                   jax.ShapeDtypeStruct((nr, cp), jnp.float32)),
        compiler_params=pltpu.CompilerParams(vmem_limit_bytes=_vmem_limit()),
    )(x_p, w_p, b_p)
    return logits_p[:n, :num_classes], probas_p[:n, :num_classes]


# ----------------------------------------------------------------------------------
# Network glue (NHWC, bf16 activations end-to-end internally)
# ----------------------------------------------------------------------------------
def maxpool2(x):
    n, h, w, c = x.shape
    assert h % 2 == 0 and w % 2 == 0
    return jnp.max(x.reshape(n, h // 2, 2, w // 2, 2, c), axis=(2, 4))


def conv_block(x, p, *, padding, relu):
    return conv_bn_act(x, p["w"], p["gamma"], p["beta"], padding=padding, relu=relu)


def res_block(x, p):
    f1 = conv_block(x, p["c1"], padding=0, relu=True)
    f2 = conv_block(f1, p["c2"], padding=1, relu=True)
    f3 = conv_block(f2, p["c3"], padding=0, relu=False)
    f3 = se_block(f3, p["se"])
    return jnp.maximum(f3 + x, jnp.zeros((), x.dtype))


def network_forward(x_nchw, params):
    x = jnp.transpose(x_nchw, (0, 2, 3, 1))                    # NCHW -> NHWC (once)
    # TODO(synk): nn.Dropout(0.4) calls are treated as identity (deterministic forward).
    x = conv_block(x, params["c1"], padding=1, relu=True)      # 5x5 stem
    x = res_block(x, params["rb1"])
    x = conv_block(x, params["c2"], padding=1, relu=True)
    x = res_block(x, params["rb2"])
    x = maxpool2(x)
    x = conv_block(x, params["c3"], padding=1, relu=True)
    x = res_block(x, params["rb3"])
    x = maxpool2(x)
    x = conv_block(x, params["c4"], padding=1, relu=True)
    x = res_block(x, params["rb4"])
    x = maxpool2(x)
    x = conv_block(x, params["c5"], padding=1, relu=True)
    x = res_block(x, params["rb5"])
    x = maxpool2(x)
    n = x.shape[0]
    flat = jnp.transpose(x, (0, 3, 1, 2)).reshape(n, -1)       # torch.flatten order (C,H,W)
    logits, probas = fc_softmax(flat, params["fc_w"], params["fc_b"])
    return logits, probas


# ----------------------------------------------------------------------------------
# Parameter initialization (mirrors the PyTorch module structure)
# ----------------------------------------------------------------------------------
def _init_convblock(key, cin, cout, k):
    kw_key, kg, kb = jax.random.split(key, 3)
    fan_in = cin * k * k
    return {"w": jax.random.normal(kw_key, (cout, cin, k, k), jnp.float32) * (fan_in ** -0.5),
            "gamma": 1.0 + 0.1 * jax.random.normal(kg, (cout,), jnp.float32),
            "beta": 0.1 * jax.random.normal(kb, (cout,), jnp.float32)}


def _init_se(key, c, ratio):
    k1, k2 = jax.random.split(key)
    hidden = c // ratio
    return {"w1": jax.random.normal(k1, (hidden, c), jnp.float32) * (c ** -0.5),
            "w2": jax.random.normal(k2, (c, hidden), jnp.float32) * (hidden ** -0.5)}


def _init_resblock(key, cin, cout):
    res = cin // 4
    k1, k2, k3, k4 = jax.random.split(key, 4)
    return {"c1": _init_convblock(k1, cin, res, 1),
            "c2": _init_convblock(k2, res, res, 3),
            "c3": _init_convblock(k3, res, cout, 1),
            "se": _init_se(k4, cout, 8)}


def init_network(key, in_channels, num_classes, fc_in_features):
    keys = jax.random.split(key, 12)
    return {
        "c1": _init_convblock(keys[0], in_channels, 64, 5),
        "rb1": _init_resblock(keys[1], 64, 64),
        "c2": _init_convblock(keys[2], 64, 128, 3),
        "rb2": _init_resblock(keys[3], 128, 128),
        "c3": _init_convblock(keys[4], 128, 192, 3),
        "rb3": _init_resblock(keys[5], 192, 192),
        "c4": _init_convblock(keys[6], 192, 256, 3),
        "rb4": _init_resblock(keys[7], 256, 256),
        "c5": _init_convblock(keys[8], 256, 320, 3),
        "rb5": _init_resblock(keys[9], 320, 320),
        "fc_w": jax.random.normal(keys[10], (num_classes, fc_in_features), jnp.float32)
                * (fc_in_features ** -0.5),
        "fc_b": 0.1 * jax.random.normal(keys[11], (num_classes,), jnp.float32),
    }


# ----------------------------------------------------------------------------------
if __name__ == "__main__":
    # 18x18 input so the 5x5 / pad-1 stem gives 16x16 and four 2x2 max-pools end at 1x1.
    N, CIN, H, W = 2, 4, 18, 18
    NUM_CLASSES = 10

    key = jax.random.PRNGKey(0)
    k_params, k_x, k_t = jax.random.split(key, 3)

    s = H + 2 * 1 - 5 + 1                    # spatial after the 5x5 stem
    for _ in range(4):
        s //= 2                              # four 2x2 max-pools
    # NOTE: the original model hard-codes fc1 in_features=320*7*7 (114x114 inputs); here
    # the fc layer is sized to the actual flattened feature count of the small test input.
    params = init_network(k_params, CIN, NUM_CLASSES, fc_in_features=320 * s * s)
    x = jax.random.normal(k_x, (N, CIN, H, W), dtype=jnp.float32)

    # ---- unit check A: fused KxK Conv+BN kernel vs lax.conv + batch-stat BN --------
    cb = params["c1"]
    x_nhwc = jnp.transpose(x, (0, 2, 3, 1))
    out_cb = conv_bn_act(x_nhwc, cb["w"], cb["gamma"], cb["beta"], padding=1, relu=False)
    out_cb = jnp.transpose(out_cb.astype(jnp.float32), (0, 3, 1, 2))
    y_ref = jax.lax.conv_general_dilated(
        x.astype(jnp.bfloat16), cb["w"].astype(jnp.bfloat16),
        window_strides=(1, 1), padding=((1, 1), (1, 1)),
        dimension_numbers=("NCHW", "OIHW", "NCHW"),
        preferred_element_type=jnp.float32)
    mu = jnp.mean(y_ref, axis=(0, 2, 3), keepdims=True)
    va = jnp.mean((y_ref - mu) ** 2, axis=(0, 2, 3), keepdims=True)
    sc = cb["gamma"].reshape(1, -1, 1, 1) * jax.lax.rsqrt(va + BN_EPS)
    y_bf = y_ref.astype(jnp.bfloat16).astype(jnp.float32)      # kernel stores y as bf16
    ref = y_bf * sc + cb["beta"].reshape(1, -1, 1, 1) - mu * sc
    err = float(jnp.max(jnp.abs(out_cb - ref)))
    assert err < 3e-2, f"KxK ConvBlock kernel mismatch vs reference: {err}"

    # ---- unit check B: flat 1x1 Conv+BN(+ReLU) kernel vs matmul reference ----------
    cb1 = params["rb1"]["c1"]                                  # 64 -> 16, 1x1
    x1 = jax.random.normal(k_t, (2, 16, 16, 64), jnp.float32)
    out1 = conv_bn_act(x1, cb1["w"], cb1["gamma"], cb1["beta"], padding=0, relu=True)
    w11 = cb1["w"][:, :, 0, 0]                                 # (16, 64)
    y1 = jnp.einsum("nhwc,oc->nhwo", x1.astype(jnp.bfloat16), w11.astype(jnp.bfloat16),
                    preferred_element_type=jnp.float32)
    mu1 = jnp.mean(y1, axis=(0, 1, 2), keepdims=True)
    va1 = jnp.mean((y1 - mu1) ** 2, axis=(0, 1, 2), keepdims=True)
    sc1 = cb1["gamma"].reshape(1, 1, 1, -1) * jax.lax.rsqrt(va1 + BN_EPS)
    y1_bf = y1.astype(jnp.bfloat16).astype(jnp.float32)
    ref1 = jnp.maximum(y1_bf * sc1 + cb1["beta"].reshape(1, 1, 1, -1) - mu1 * sc1, 0.0)
    err1 = float(jnp.max(jnp.abs(out1.astype(jnp.float32) - ref1)))
    assert err1 < 3e-2, f"1x1 ConvBlock kernel mismatch vs reference: {err1}"

    # ---- full Network forward --------------------------------------------------------
    logits, probas = jax.jit(network_forward)(x, params)
    logits, probas = jax.block_until_ready((logits, probas))

    assert logits.shape == (N, NUM_CLASSES) and probas.shape == (N, NUM_CLASSES)
    assert bool(jnp.all(jnp.isfinite(logits))) and bool(jnp.all(jnp.isfinite(probas)))
    assert float(jnp.max(jnp.abs(jnp.sum(probas, axis=1) - 1.0))) < 1e-3

    print("KERNEL_OK")
</pallas_src>

<mosaic_0001>
module attributes {stable_mosaic.version = 11 : i64} {
  func.func @_conv_row_kernel(%arg0: i32, %arg1: i32, %arg2: memref<2x1x20x4xbf16, #tpu.memory_space<vmem>>, %arg3: memref<1x20x64xbf16, #tpu.memory_space<vmem>>, %arg4: memref<2x1x16x64xbf16, #tpu.memory_space<vmem>>, %arg5: memref<8x64xf32, #tpu.memory_space<vmem>>, %arg6: memref<32x64xf32, #tpu.memory_space<vmem>>) attributes {dimension_semantics = [#tpu.dimension_semantics<parallel>, #tpu.dimension_semantics<arbitrary>], iteration_bounds = array<i64: 16, 5>, scalar_prefetch = 0 : i64, scratch_operands = 1 : i64, tpu.core_type = #tpu.core_type<tc>, window_params = [{transform_indices = @transform_0, window_bounds = array<i64: 2, 1, 20, 4>}, {transform_indices = @transform_1, window_bounds = array<i64: 1, 20, 64>}, {transform_indices = @transform_2, window_bounds = array<i64: 2, 1, 16, 64>}, {transform_indices = @transform_3, window_bounds = array<i64: 8, 64>}]} {
    %c0_i32 = arith.constant 0 : i32
    %0 = arith.cmpi eq, %arg1, %c0_i32 : i32
    %1 = arith.extui %0 : i1 to i32
    %c0_i32_0 = arith.constant 0 : i32
    %2 = arith.cmpi ne, %1, %c0_i32_0 : i32
    scf.if %2 {
      %cst_25 = arith.constant 0.000000e+00 : f32
      %42 = vector.broadcast %cst_25 : f32 to vector<32x64xf32>
      %c0_26 = arith.constant 0 : index
      %c0_27 = arith.constant 0 : index
      %43 = vector.load %arg6[%c0_26, %c0_27] : memref<32x64xf32, #tpu.memory_space<vmem>>, vector<32x64xf32>
      tpu.vector_store %arg6[%c0_26, %c0_27], %42 {strides = array<i32>} : memref<32x64xf32, #tpu.memory_space<vmem>>, vector<32x64xf32>,
    } else {
    }
    %c0 = arith.constant 0 : index
    %c0_1 = arith.constant 0 : index
    %c0_2 = arith.constant 0 : index
    %c0_3 = arith.constant 0 : index
    %3 = vector.load %arg2[%c0, %c0_1, %c0_2, %c0_3] : memref<2x1x20x4xbf16, #tpu.memory_space<vmem>>, vector<2x1x20x4xbf16>
    %4 = vector.shape_cast %3 : vector<2x1x20x4xbf16> to vector<2x20x4xbf16>
    %cst = arith.constant 0.000000e+00 : f32
    %5 = vector.broadcast %cst : f32 to vector<32x64xf32>
    %6 = vector.extract_strided_slice %4 {offsets = [0, 0, 0], sizes = [2, 16, 4], strides = [1, 1, 1]} : vector<2x20x4xbf16> to vector<2x16x4xbf16>
    %7 = vector.shape_cast %6 : vector<2x16x4xbf16> to vector<32x4xbf16>
    %c0_4 = arith.constant 0 : index
    %c0_5 = arith.constant 0 : index
    %c0_6 = arith.constant 0 : index
    %8 = vector.load %arg3[%c0_4, %c0_5, %c0_6] : memref<1x20x64xbf16, #tpu.memory_space<vmem>>, vector<1x4x64xbf16>
    %9 = vector.shape_cast %8 : vector<1x4x64xbf16> to vector<4x64xbf16>
    %cst_7 = arith.constant dense<0.000000e+00> : vector<32x64xf32>
    %10 = tpu.matmul %7, %9, %cst_7 {dimension_numbers = #tpu.dot_dimension_numbers<[1], [0], [0], [1], [0, 0, 1, 1], [], []>} : vector<32x4xbf16>, vector<4x64xbf16>, vector<32x64xf32> -> vector<32x64xf32>
    %11 = arith.addf %5, %10 : vector<32x64xf32>
    %12 = vector.extract_strided_slice %4 {offsets = [0, 1, 0], sizes = [2, 16, 4], strides = [1, 1, 1]} : vector<2x20x4xbf16> to vector<2x16x4xbf16>
    %13 = vector.shape_cast %12 : vector<2x16x4xbf16> to vector<32x4xbf16>
    %c0_8 = arith.constant 0 : index
    %c4 = arith.constant 4 : index
    %c0_9 = arith.constant 0 : index
    %14 = vector.load %arg3[%c0_8, %c4, %c0_9] : memref<1x20x64xbf16, #tpu.memory_space<vmem>>, vector<1x4x64xbf16>
    %15 = vector.shape_cast %14 : vector<1x4x64xbf16> to vector<4x64xbf16>
    %cst_10 = arith.constant dense<0.000000e+00> : vector<32x64xf32>
    %16 = tpu.matmul %13, %15, %cst_10 {dimension_numbers = #tpu.dot_dimension_numbers<[1], [0], [0], [1], [0, 0, 1, 1], [], []>} : vector<32x4xbf16>, vector<4x64xbf16>, vector<32x64xf32> -> vector<32x64xf32>
    %17 = arith.addf %11, %16 : vector<32x64xf32>
    %18 = vector.extract_strided_slice %4 {offsets = [0, 2, 0], sizes = [2, 16, 4], strides = [1, 1, 1]} : vector<2x20x4xbf16> to vector<2x16x4xbf16>
    %19 = vector.shape_cast %18 : vector<2x16x4xbf16> to vector<32x4xbf16>
    %c0_11 = arith.constant 0 : index
    %c8 = arith.constant 8 : index
    %c0_12 = arith.constant 0 : index
    %20 = vector.load %arg3[%c0_11, %c8, %c0_12] : memref<1x20x64xbf16, #tpu.memory_space<vmem>>, vector<1x4x64xbf16>
    %21 = vector.shape_cast %20 : vector<1x4x64xbf16> to vector<4x64xbf16>
    %cst_13 = arith.constant dense<0.000000e+00> : vector<32x64xf32>
    %22 = tpu.matmul %19, %21, %cst_13 {dimension_numbers = #tpu.dot_dimension_numbers<[1], [0], [0], [1], [0, 0, 1, 1], [], []>} : vector<32x4xbf16>, vector<4x64xbf16>, vector<32x64xf32> -> vector<32x64xf32>
    %23 = arith.addf %17, %22 : vector<32x64xf32>
    %24 = vector.extract_strided_slice %4 {offsets = [0, 3, 0], sizes = [2, 16, 4], strides = [1, 1, 1]} : vector<2x20x4xbf16> to vector<2x16x4xbf16>
    %25 = vector.shape_cast %24 : vector<2x16x4xbf16> to vector<32x4xbf16>
    %c0_14 = arith.constant 0 : index
    %c12 = arith.constant 12 : index
    %c0_15 = arith.constant 0 : index
    %26 = vector.load %arg3[%c0_14, %c12, %c0_15] : memref<1x20x64xbf16, #tpu.memory_space<vmem>>, vector<1x4x64xbf16>
    %27 = vector.shape_cast %26 : vector<1x4x64xbf16> to vector<4x64xbf16>
    %cst_16 = arith.constant dense<0.000000e+00> : vector<32x64xf32>
    %28 = tpu.matmul %25, %27, %cst_16 {dimension_numbers = #tpu.dot_dimension_numbers<[1], [0], [0], [1], [0, 0, 1, 1], [], []>} : vector<32x4xbf16>, vector<4x64xbf16>, vector<32x64xf32> -> vector<32x64xf32>
    %29 = arith.addf %23, %28 : vector<32x64xf32>
    %30 = vector.extract_strided_slice %4 {offsets = [0, 4, 0], sizes = [2, 16, 4], strides = [1, 1, 1]} : vector<2x20x4xbf16> to vector<2x16x4xbf16>
    %31 = vector.shape_cast %30 : vector<2x16x4xbf16> to vector<32x4xbf16>
    %c0_17 = arith.constant 0 : index
    %c16 = arith.constant 16 : index
    %c0_18 = arith.constant 0 : index
    %32 = vector.load %arg3[%c0_17, %c16, %c0_18] : memref<1x20x64xbf16, #tpu.memory_space<vmem>>, vector<1x4x64xbf16>
    %33 = vector.shape_cast %32 : vector<1x4x64xbf16> to vector<4x64xbf16>
    %cst_19 = arith.constant dense<0.000000e+00> : vector<32x64xf32>
    %34 = tpu.matmul %31, %33, %cst_19 {dimension_numbers = #tpu.dot_dimension_numbers<[1], [0], [0], [1], [0, 0, 1, 1], [], []>} : vector<32x4xbf16>, vector<4x64xbf16>, vector<32x64xf32> -> vector<32x64xf32>
    %35 = arith.addf %29, %34 : vector<32x64xf32>
    %c0_20 = arith.constant 0 : index
    %c0_21 = arith.constant 0 : index
    %36 = vector.load %arg6[%c0_20, %c0_21] : memref<32x64xf32, #tpu.memory_space<vmem>>, vector<32x64xf32>
    %37 = arith.addf %36, %35 : vector<32x64xf32>
    %c0_22 = arith.constant 0 : index
    %c0_23 = arith.constant 0 : index
    %38 = vector.load %arg6[%c0_22, %c0_23] : memref<32x64xf32, #tpu.memory_space<vmem>>, vector<32x64xf32>
    tpu.vector_store %arg6[%c0_22, %c0_23], %37 {strides = array<i32>} : memref<32x64xf32, #tpu.memory_space<vmem>>, vector<32x64xf32>,
    %c4_i32 = arith.constant 4 : i32
    %39 = arith.cmpi eq, %arg1, %c4_i32 : i32
    %40 = arith.extui %39 : i1 to i32
    %c0_i32_24 = arith.constant 0 : i32
    %41 = arith.cmpi ne, %40, %c0_i32_24 : i32
    scf.if %41 {
      %c0_25 = arith.constant 0 : index
      %c0_26 = arith.constant 0 : index
      %42 = vector.load %arg6[%c0_25, %c0_26] : memref<32x64xf32, #tpu.memory_space<vmem>>, vector<32x64xf32>
      %43 = vector.shape_cast %42 : vector<32x64xf32> to vector<2x1x16x64xf32>
      %44 = arith.truncf %43 : vector<2x1x16x64xf32> to vector<2x1x16x64xbf16>
      %c0_27 = arith.constant 0 : index
      %c0_28 = arith.constant 0 : index
      %c0_29 = arith.constant 0 : index
      %c0_30 = arith.constant 0 : index
      %45 = vector.load %arg4[%c0_27, %c0_28, %c0_29, %c0_30] : memref<2x1x16x64xbf16, #tpu.memory_space<vmem>>, vector<2x1x16x64xbf16>
      tpu.vector_store %arg4[%c0_27, %c0_28, %c0_29, %c0_30], %44 {strides = array<i32>} : memref<2x1x16x64xbf16, #tpu.memory_space<vmem>>, vector<2x1x16x64xbf16>,
      %cst_31 = arith.constant dense<0.000000e+00> : vector<64xf32>
      %46 = vector.multi_reduction <add>, %42, %cst_31 [0] : vector<32x64xf32> to vector<64xf32>
      %47 = vector.shape_cast %46 : vector<64xf32> to vector<1x64xf32>
      %48 = arith.mulf %42, %42 : vector<32x64xf32>
      %cst_32 = arith.constant dense<0.000000e+00> : vector<64xf32>
      %49 = vector.multi_reduction <add>, %48, %cst_32 [0] : vector<32x64xf32> to vector<64xf32>
      %50 = vector.shape_cast %49 : vector<64xf32> to vector<1x64xf32>
      %51 = tpu.iota {dimensions = array<i32: 0>} : vector<8x64xi32>
      %c0_i32_33 = arith.constant 0 : i32
      %52 = vector.broadcast %c0_i32_33 : i32 to vector<8x64xi32>
      %53 = arith.cmpi eq, %51, %52 : vector<8x64xi32>
      %c1_i32 = arith.constant 1 : i32
      %54 = vector.broadcast %c1_i32 : i32 to vector<8x64xi32>
      %55 = arith.cmpi eq, %51, %54 : vector<8x64xi32>
      %cst_34 = arith.constant 0.000000e+00 : f32
      %56 = vector.shape_cast %50 : vector<1x64xf32> to vector<1x64xf32>
      %57 = vector.broadcast %56 : vector<1x64xf32> to vector<8x64xf32>
      %58 = vector.broadcast %cst_34 : f32 to vector<8x64xf32>
      %59 = arith.select %55, %57, %58 : vector<8x64xi1>, vector<8x64xf32>
      %60 = vector.shape_cast %47 : vector<1x64xf32> to vector<1x64xf32>
      %61 = vector.broadcast %60 : vector<1x64xf32> to vector<8x64xf32>
      %62 = arith.select %53, %61, %59 : vector<8x64xi1>, vector<8x64xf32>
      %c0_35 = arith.constant 0 : index
      %c0_36 = arith.constant 0 : index
      %63 = vector.load %arg5[%c0_35, %c0_36] : memref<8x64xf32, #tpu.memory_space<vmem>>, vector<8x64xf32>
      tpu.vector_store %arg5[%c0_35, %c0_36], %62 {strides = array<i32>} : memref<8x64xf32, #tpu.memory_space<vmem>>, vector<8x64xf32>,
    } else {
    }
    return
  }
  func.func @transform_0(%arg0: i32, %arg1: i32) -> (i32, i32, i32, i32) {
    %0 = arith.addi %arg0, %arg1 : i32
    %c0_i32 = arith.constant 0 : i32
    %c0_i32_0 = arith.constant 0 : i32
    %c0_i32_1 = arith.constant 0 : i32
    %c0_i32_2 = arith.constant 0 : i32
    return %c0_i32, %0, %c0_i32_0, %c0_i32_1 : i32, i32, i32, i32
  }
  func.func @transform_1(%arg0: i32, %arg1: i32) -> (i32, i32, i32) {
    %c0_i32 = arith.constant 0 : i32
    %c0_i32_0 = arith.constant 0 : i32
    %c0_i32_1 = arith.constant 0 : i32
    return %arg1, %c0_i32, %c0_i32_0 : i32, i32, i32
  }
  func.func @transform_2(%arg0: i32, %arg1: i32) -> (i32, i32, i32, i32) {
    %c0_i32 = arith.constant 0 : i32
    %c0_i32_0 = arith.constant 0 : i32
    %c0_i32_1 = arith.constant 0 : i32
    %c0_i32_2 = arith.constant 0 : i32
    return %c0_i32, %arg0, %c0_i32_0, %c0_i32_1 : i32, i32, i32, i32
  }
  func.func @transform_3(%arg0: i32, %arg1: i32) -> (i32, i32) {
    %c0_i32 = arith.constant 0 : i32
    %c0_i32_0 = arith.constant 0 : i32
    return %arg0, %c0_i32 : i32, i32
  }
}

</mosaic_0001>

<llo_original>
// kernel: tpu_custom_call.1
$region0: #{tpu_custom_call.1}
  #allocation0 [shape = 'u32[]', space=smem, size = 0x4, offset = 0x4, fixed_abs, tag = 'smem constant byte address 0x4 - core index']
  #allocation1 [shape = 'u32[144,128]{1,0:T(1,128)}', space=vmem, size = 0x12000, scoped, tag = 'internal scratch']
  #allocation2 [shape = 'f32[32,64]{1,0:T(8,128)}', space=vmem, size = 0x4000, scoped, tag = 'scratch operand']
  #allocation6 [shape = 's32[]', space=sflag, size = 0x4, offset = 0, fixed_abs, tag = 'sflag constant byte address 0x0 - dummy sync flag']
  %s0 = inlined_call_operand.vmem [shape: bf16[2,20,20,4], index: 0, kind: input, shape index: {}]
  %s1 = inlined_call_operand.vmem [shape: bf16[5,20,64], index: 1, kind: input, shape index: {}]
  %s2 = inlined_call_operand.hbm [shape: bf16[2,16,16,64], index: 2, kind: output, shape index: {0}]
  %s3 = inlined_call_operand.vmem [shape: f32[128,64], index: 3, kind: output, shape index: {1}]
  %4 = xla_tuple %s2, %s3
  %s5 = sld [smem:[#allocation0]]
  $region98: #{tpu_custom_call.1} parent=0
    _
  %s7 = ssub.s32 1, %s5
  %s8 = scalar_select 0, %s7, %s5
  $region1: #{tpu_custom_call.1} parent=0
    #allocation3 [shape = 'u8[24576]{0}', space=vmem, size = 0x6000, scoped, tag = 'input window, operand 0']
    #allocation4 [shape = 'u8[16384]{0}', space=vmem, size = 0x4000, scoped, tag = 'output window, operand 0']
    #allocation5 [shape = 's32[2]{0}', space=sflag, size = 0x8, scoped, tag = 'scoped memory for tpu_custom_call.1']
    %9 = vsyncpa [#allocation5], 0
    %s10 = scalar_lea.sflag [#allocation5], 1
    %11 = vsyncpa %s10, 0
    loop: start=0, step=1, limit=82
    $region2: #{tpu_custom_call.1} parent=1 // loop_pre_header
      _
    $region3: #{tpu_custom_call.1} parent=1 // loop_header
      %s13 = sphi 0, %s17
      %p14 = scmp.ge.s32.totalorder %s13, 82
      %s20 = sphi 0, %s32
      %s21 = sphi 0, %s28
      %s22 = sphi 0, %s20
      %s23 = sphi 0, %s21
      %s24 = sphi 0, %s22
      %s25 = sphi 0, %s23
      %s37 = sphi 0, %s39
      %s40 = sphi 0, %s37
      %s41 = sphi 0, %s40
      %s57 = sphi 0, %s41
      %s63 = sphi 0, %s65
      %s66 = sphi 0, %s63
      %s67 = sphi 0, %s66
      %s83 = sphi 0, %s67
      %s89 = sphi 0, %s91
      %s92 = sphi 0, %s89
      %s93 = sphi 0, %s92
      %s109 = sphi 0, %s93
      %s115 = sphi 0, %s117
      %s118 = sphi 0, %s115
      %s119 = sphi 0, %s118
      %s135 = sphi 0, %s119
    $region4: #{tpu_custom_call.1} parent=1 // loop_header_branch
      %16 = sbr.rel (%p14) target = $region8
    $region5: #{tpu_custom_call.1} parent=1 // loop_body
      %s18 = ssub.s32 %s13, 1
      %s19 = ssub.s32 %s13, 2
      %s26 = sadd.s32 1, %s21
      %p27 = scmp.ge.s32.totalorder %s26, 5
      %s28 = scalar_select %p27, 0, %s26
      %s29 = sadd.s32 1, %s20
      %s30 = scalar_select %p27, %s29, %s20
      %p31 = scmp.ge.s32.totalorder %s30, 16
      %s32 = scalar_select %p31, 0, %s30
      %s33 = sadd.s32 %s20, %s21
      %s34 = sadd.s32 %s32, %s28
      %s35 = ssub.s32 %s33, %s34
      %p36 = scmp.eq.s32.totalorder %s35, 0
      %s38 = sadd.s32 %s37, 1
      %s39 = scalar_select %p36, %s37, %s38
      %p42 = pneg %p36
      %p43 = scmp.eq.s32.totalorder %s13, 79
      %p44 = por %p42, %p43
      %p45 = scmp.ne.s32.totalorder %s37, %s40
      %p46 = scmp.eq.s32.totalorder %s13, 0
      %p47 = por %p45, %p46
      %p48 = scmp.ne.s32.totalorder %s37, %s40
      %p49 = scmp.eq.s32.totalorder %s18, 79
      %p50 = por %p48, %p49
      %p51 = scmp.ne.s32.totalorder %s40, %s41
      %p52 = scmp.eq.s32.totalorder %s18, 0
      %p53 = por %p51, %p52
      %p54 = scmp.ne.s32.totalorder %s40, %s41
      %p55 = scmp.eq.s32.totalorder %s19, 79
      %p56 = por %p54, %p55
      %p58 = scmp.ne.s32.totalorder %s41, %s57
      %p59 = scmp.eq.s32.totalorder %s19, 0
      %p60 = por %p58, %p59
      %s61 = ssub.s32 %s21, %s28
      %p62 = scmp.eq.s32.totalorder %s61, 0
      %s64 = sadd.s32 %s63, 1
      %s65 = scalar_select %p62, %s63, %s64
      %p68 = pneg %p62
      %p69 = scmp.eq.s32.totalorder %s13, 79
      %p70 = por %p68, %p69
      %p71 = scmp.ne.s32.totalorder %s63, %s66
      %p72 = scmp.eq.s32.totalorder %s13, 0
      %p73 = por %p71, %p72
      %p74 = scmp.ne.s32.totalorder %s63, %s66
      %p75 = scmp.eq.s32.totalorder %s18, 79
      %p76 = por %p74, %p75
      %p77 = scmp.ne.s32.totalorder %s66, %s67
      %p78 = scmp.eq.s32.totalorder %s18, 0
      %p79 = por %p77, %p78
      %p80 = scmp.ne.s32.totalorder %s66, %s67
      %p81 = scmp.eq.s32.totalorder %s19, 79
      %p82 = por %p80, %p81
      %p84 = scmp.ne.s32.totalorder %s67, %s83
      %p85 = scmp.eq.s32.totalorder %s19, 0
      %p86 = por %p84, %p85
      %s87 = ssub.s32 %s20, %s32
      %p88 = scmp.eq.s32.totalorder %s87, 0
      %s90 = sadd.s32 %s89, 1
      %s91 = scalar_select %p88, %s89, %s90
      %p94 = pneg %p88
      %p95 = scmp.eq.s32.totalorder %s13, 79
      %p96 = por %p94, %p95
      %p97 = scmp.ne.s32.totalorder %s89, %s92
      %p98 = scmp.eq.s32.totalorder %s13, 0
      %p99 = por %p97, %p98
      %p100 = scmp.ne.s32.totalorder %s89, %s92
      %p101 = scmp.eq.s32.totalorder %s18, 79
      %p102 = por %p100, %p101
      %p103 = scmp.ne.s32.totalorder %s92, %s93
      %p104 = scmp.eq.s32.totalorder %s18, 0
      %p105 = por %p103, %p104
      %p106 = scmp.ne.s32.totalorder %s92, %s93
      %p107 = scmp.eq.s32.totalorder %s19, 79
      %p108 = por %p106, %p107
      %p110 = scmp.ne.s32.totalorder %s93, %s109
      %p111 = scmp.eq.s32.totalorder %s19, 0
      %p112 = por %p110, %p111
      %s113 = ssub.s32 %s20, %s32
      %p114 = scmp.eq.s32.totalorder %s113, 0
      %s116 = sadd.s32 %s115, 1
      %s117 = scalar_select %p114, %s115, %s116
      %p120 = pneg %p114
      %p121 = scmp.eq.s32.totalorder %s13, 79
      %p122 = por %p120, %p121
      %p123 = scmp.ne.s32.totalorder %s115, %s118
      %p124 = scmp.eq.s32.totalorder %s13, 0
      %p125 = por %p123, %p124
      %p126 = scmp.ne.s32.totalorder %s115, %s118
      %p127 = scmp.eq.s32.totalorder %s18, 79
      %p128 = por %p126, %p127
      %p129 = scmp.ne.s32.totalorder %s118, %s119
      %p130 = scmp.eq.s32.totalorder %s18, 0
      %p131 = por %p129, %p130
      %p132 = scmp.ne.s32.totalorder %s118, %s119
      %p133 = scmp.eq.s32.totalorder %s19, 79
      %p134 = por %p132, %p133
      %p136 = scmp.ne.s32.totalorder %s119, %s135
      %p137 = scmp.eq.s32.totalorder %s19, 0
      %p138 = por %p136, %p137
      %p139 = scmp.le.s32.totalorder 1, %s13
      %p140 = scmp.lt.s32.totalorder %s13, 81
      %p141 = pnand %p139, %p140
      %p142 = pneg %p141
      // Predicated region
      $region9: #{tpu_custom_call.1} parent=5 // pred_check
        _
      $region10: #{tpu_custom_call.1} parent=5 // pred_check_branch
        %144 = sbr.rel (%p141) target = $region12
      $region11: #{tpu_custom_call.1} parent=5 // pred_region
        %s145 = ssub.s32 %s13, 1
      $region12: #{tpu_custom_call.1} parent=5 // pred_fallthru
        _
      %p146 = scmp.lt.s32.totalorder %s13, 80
      // Predicated region
      $region13: #{tpu_custom_call.1} parent=5 // pred_check
        %p147 = pneg %p146
      $region14: #{tpu_custom_call.1} parent=5 // pred_check_branch
        %149 = sbr.rel (%p147) target = $region16
      $region15: #{tpu_custom_call.1} parent=5 // pred_region
        // Predicated region
        $region17: #{tpu_custom_call.1} parent=15 // pred_check
          %p150 = pneg %p47
        $region18: #{tpu_custom_call.1} parent=15 // pred_check_branch
          %152 = sbr.rel (%p150) target = $region20
        $region19: #{tpu_custom_call.1} parent=15 // pred_region
          %s153 = sand.u32 %s37, 1
          %s154 = sand.u32 %s37, 1
          %s155 = smul.addr %s154, 24
          %s156 = scalar_lea.vmem [#allocation3], %s155
          %s157 = sadd.s32 %s20, %s21
          %s158 = smul.addr %s157, 3
          %s159 = smul.addr %s158, 4
          %s160 = scalar_lea.vmem %s0, %s159
          // Predicated region
          $region21: #{tpu_custom_call.1} parent=19 // pred_check
            _
          $region22: #{tpu_custom_call.1} parent=19 // pred_check_branch
            %162 = sbr.rel (0) target = $region24
          $region23: #{tpu_custom_call.1} parent=19 // pred_region
            // Predicated region
            $region25: #{tpu_custom_call.1} parent=23 // pred_check
              _
            $region26: #{tpu_custom_call.1} parent=23 // pred_check_branch
              %164 = sbr.rel target = $region28
            $region27: #{tpu_custom_call.1} parent=23 // pred_region
              // Predicated region
              $region40: #{tpu_custom_call.1} parent=27 // pred_check
                _
              $region41: #{tpu_custom_call.1} parent=27 // pred_check_branch
                %189 = sbr.rel (0) target = $region43
              $region42: #{tpu_custom_call.1} parent=27 // pred_region
                loop: start=0, step=1, limit=1
                $region44: #{tpu_custom_call.1} parent=42 // loop_pre_header
                  _
                $region45: #{tpu_custom_call.1} parent=42 // loop_header
                  %s191 = sphi 0, %s195
                  %p192 = scmp.ge.s32.totalorder %s191, 1
                  %s196 = sphi %s160, %s160
                  %s197 = sphi %s156, %s156
                $region46: #{tpu_custom_call.1} parent=42 // loop_header_branch
                  %194 = sbr.rel (%p192) target = $region50
                $region47: #{tpu_custom_call.1} parent=42 // loop_body
                  _
                $region48: #{tpu_custom_call.1} parent=42 // loop_footer
                  %s195 = sadd.s32 1, %s191
                $region49: #{tpu_custom_call.1} parent=42 // loop_footer_branch
                  %190 = sbr.rel target = $region45
                $region50: #{tpu_custom_call.1} parent=42 // loop_exit
                  _
                loop: start=0, step=1, limit=1
                $region51: #{tpu_custom_call.1} parent=42 // loop_pre_header
                  _
                $region52: #{tpu_custom_call.1} parent=42 // loop_header
                  %s200 = sphi 0, %s204
                  %p201 = scmp.ge.s32.totalorder %s200, 1
                  %s205 = sphi %s160, %s160
                  %s206 = sphi %s156, %s156
                $region53: #{tpu_custom_call.1} parent=42 // loop_header_branch
                  %203 = sbr.rel (%p201) target = $region57
                $region54: #{tpu_custom_call.1} parent=42 // loop_body
                  %v207 = vld [vmem:[%s205] sm:$0xf]
                  %208 = vst [vmem:[%s206] sm:$0xf] %v207
                  %v209 = vld [vmem:[%s205 + $0x4] sm:$0xf]
                  %210 = vst [vmem:[%s206 + $0x4] sm:$0xf] %v209
                  %v211 = vld [vmem:[%s205 + $0x8] sm:$0xf]
                  %212 = vst [vmem:[%s206 + $0x8] sm:$0xf] %v211
                  %v213 = vld [vmem:[%s205 + $0xf0] sm:$0xf]
                  %214 = vst [vmem:[%s206 + $0xc] sm:$0xf] %v213
                  %v215 = vld [vmem:[%s205 + $0xf4] sm:$0xf]
                  %216 = vst [vmem:[%s206 + $0x10] sm:$0xf] %v215
                  %v217 = vld [vmem:[%s205 + $0xf8] sm:$0xf]
                  %218 = vst [vmem:[%s206 + $0x14] sm:$0xf] %v217
                $region55: #{tpu_custom_call.1} parent=42 // loop_footer
                  %s204 = sadd.s32 1, %s200
                $region56: #{tpu_custom_call.1} parent=42 // loop_footer_branch
                  %199 = sbr.rel target = $region52
                $region57: #{tpu_custom_call.1} parent=42 // loop_exit
                  _
              $region43: #{tpu_custom_call.1} parent=27 // pred_fallthru
                _
            $region28: #{tpu_custom_call.1} parent=23 // pred_fallthru
              _
            // Predicated region
            $region29: #{tpu_custom_call.1} parent=23 // pred_check
              _
            $region30: #{tpu_custom_call.1} parent=23 // pred_check_branch
              %166 = sbr.rel (0) target = $region32
            $region31: #{tpu_custom_call.1} parent=23 // pred_region
              loop: start=0, step=1, limit=1
              $region33: #{tpu_custom_call.1} parent=31 // loop_pre_header
                _
              $region34: #{tpu_custom_call.1} parent=31 // loop_header
                %s169 = sphi 0, %s173
                %p170 = scmp.ge.s32.totalorder %s169, 1
                %s174 = sphi %s160, %s160
                %s175 = sphi %s156, %s156
              $region35: #{tpu_custom_call.1} parent=31 // loop_header_branch
                %172 = sbr.rel (%p170) target = $region39
              $region36: #{tpu_custom_call.1} parent=31 // loop_body
                %v176 = vld [vmem:[%s174] sm:$0xf]
                %177 = vst [vmem:[%s175] sm:$0xf] %v176
                %v178 = vld [vmem:[%s174 + $0x4] sm:$0xf]
                %179 = vst [vmem:[%s175 + $0x4] sm:$0xf] %v178
                %v180 = vld [vmem:[%s174 + $0x8] sm:$0xf]
                %181 = vst [vmem:[%s175 + $0x8] sm:$0xf] %v180
                %v182 = vld [vmem:[%s174 + $0xf0] sm:$0xf]
                %183 = vst [vmem:[%s175 + $0xc] sm:$0xf] %v182
                %v184 = vld [vmem:[%s174 + $0xf4] sm:$0xf]
                %185 = vst [vmem:[%s175 + $0x10] sm:$0xf] %v184
                %v186 = vld [vmem:[%s174 + $0xf8] sm:$0xf]
                %187 = vst [vmem:[%s175 + $0x14] sm:$0xf] %v186
              $region37: #{tpu_custom_call.1} parent=31 // loop_footer
                %s173 = sadd.s32 1, %s169
              $region38: #{tpu_custom_call.1} parent=31 // loop_footer_branch
                %168 = sbr.rel target = $region34
              $region39: #{tpu_custom_call.1} parent=31 // loop_exit
                _
            $region32: #{tpu_custom_call.1} parent=23 // pred_fallthru
              _
          $region24: #{tpu_custom_call.1} parent=19 // pred_fallthru
            _
          %219 = vnop
        $region20: #{tpu_custom_call.1} parent=15 // pred_fallthru
          _
        // Predicated region
        $region58: #{tpu_custom_call.1} parent=15 // pred_check
          %p220 = pneg %p73
        $region59: #{tpu_custom_call.1} parent=15 // pred_check_branch
          %222 = sbr.rel (%p220) target = $region61
        $region60: #{tpu_custom_call.1} parent=15 // pred_region
          %p223 = scmp.lt.s32.totalorder %s21, 4
          %s224 = scalar_select %p223, %s21, 4
          %s225 = smul.addr %s224, 3
          %s226 = smul.addr %s225, 4
          %s227 = scalar_lea.vmem %s1, %s226
        $region61: #{tpu_custom_call.1} parent=15 // pred_fallthru
          _
      $region16: #{tpu_custom_call.1} parent=5 // pred_fallthru
        _
      %p228 = scmp.le.s32.totalorder 1, %s13
      %p229 = scmp.lt.s32.totalorder %s13, 81
      %p230 = pnand %p228, %p229
      %p231 = pneg %p230
      // Predicated region
      $region62: #{tpu_custom_call.1} parent=5 // pred_check
        _
      $region63: #{tpu_custom_call.1} parent=5 // pred_check_branch
        %233 = sbr.rel (%p230) target = $region65
      $region64: #{tpu_custom_call.1} parent=5 // pred_region
        %s234 = ssub.s32 %s13, 1
        %s235 = sand.u32 %s40, 1
        %s236 = sand.u32 %s40, 1
        %s237 = smul.addr %s236, 24
        %s238 = scalar_lea.vmem [#allocation3], %s237
        // Predicated region
        $region66: #{tpu_custom_call.1} parent=64 // pred_check
          %p239 = pneg %p53
        $region67: #{tpu_custom_call.1} parent=64 // pred_check_branch
          %241 = sbr.rel (%p239) target = $region69
        $region68: #{tpu_custom_call.1} parent=64 // pred_region
          _
        $region69: #{tpu_custom_call.1} parent=64 // pred_fallthru
          _
        %s242 = sand.u32 %s40, 1
        %s243 = sand.u32 %s40, 1
        %s244 = smul.addr %s243, 24
        %s245 = scalar_lea.vmem [#allocation3], %s244
        %p246 = pneg %p53
        %p247 = pneg %p50
        %p248 = scmp.lt.s32.totalorder %s23, 4
        %s249 = scalar_select %p248, %s23, 4
        %s250 = smul.addr %s249, 3
        %s251 = smul.addr %s250, 4
        %s252 = scalar_lea.vmem %s1, %s251
        %p253 = pneg %p79
        %p254 = pneg %p76
        %p255 = pneg %p105
        %p256 = pneg %p102
        %s257 = sand.u32 %s92, 1
        %s258 = scalar_lea.sflag [#allocation5], %s257
        %s259 = sand.u32 %s92, 1
        %s260 = smul.addr %s259, 16
        %s261 = scalar_lea.vmem [#allocation4], %s260
        %p262 = pneg %p131
        %p263 = pneg %p128
        %p264 = scmp.lt.s32.totalorder %s22, 15
        %s265 = scalar_select %p264, %s22, 15
        %s266 = smul.addr %s265, 8
        %s267 = scalar_lea.vmem %s3, %s266
        %s268 = sadd.s32 %s22, %s23
        %p269 = scmp.lt.s32.totalorder %s23, 4
        %s270 = scalar_select %p269, %s23, 4
        %s271 = smul.addr %s270, 3
        %s272 = smul.addr %s271, 4
        %s273 = scalar_lea.vmem %s1, %s272
        %p274 = scmp.lt.s32.totalorder %s22, 15
        %s275 = scalar_select %p274, %s22, 15
        %s276 = smul.addr %s275, 8
        %s277 = scalar_lea.vmem %s3, %s276
        %p279 = scmp.eq.s32.totalorder %s23, 0
        // Predicated region
        $region70: #{tpu_custom_call.1} parent=64 // pred_check
          %p280 = pneg %p279
        $region71: #{tpu_custom_call.1} parent=64 // pred_check_branch
          %282 = sbr.rel (%p280) target = $region73
        $region72: #{tpu_custom_call.1} parent=64 // pred_region
          %vm283 = vcmask 523264
          %284 = vst.msk [vmem:[#allocation2] sm:$0xff] %vm283, 0.0
          %285 = vst.msk [vmem:[#allocation2 + $0x8] sm:$0xff] %vm283, 0.0
          %286 = vst.msk [vmem:[#allocation2 + $0x10] sm:$0xff] %vm283, 0.0
          %287 = vst.msk [vmem:[#allocation2 + $0x18] sm:$0xff] %vm283, 0.0
        $region73: #{tpu_custom_call.1} parent=64 // pred_fallthru
          _
        %v288 = vld [vmem:[%s238] sm:$0xf]
        %v289 = vld [vmem:[%s238 + $0x4] sm:$0xf]
        %v290 = vld [vmem:[%s238 + $0x8] sm:$0x3]
        %v291 = vld [vmem:[%s238 + $0xc] sm:$0xf]
        %v292 = vld [vmem:[%s238 + $0x10] sm:$0xf]
        %v293 = vld [vmem:[%s238 + $0x14] sm:$0x3]
        %v294 = vld [vmem:[%s273] sm:$0x3]
        %vm295 = vsmask.f32 3328
        %vm296 = vsmask.f32 7440
        %vm297 = vmor %vm295, %vm296
        %v299 = vshrl.u32 %v288, 16
        %v301 = vrot.slane %v299, 4
        %v302 = vshll.u32 %v288, 16
        %v304 = vrot.slane %v302, 5
        %v305 = vor.u32 %v301, %v304
        %v306 = vrot.slane %v305, 4
        %v308 = vshll.u32 %v289, 16
        %v310 = vrot.slane %v308, 5
        %v311 = vsel %vm297, %v306, %v310
        %v312 = vshrl.u32 %v289, 16
        %v314 = vrot.slane %v312, 4
        %v315 = vor.u32 %v314, %v310
        %v316 = vrot.slane %v315, 4
        %v318 = vshll.u32 %v290, 16
        %v320 = vrot.slane %v318, 5
        %v321 = vsel %vm297, %v316, %v320
        %v323 = vshrl.u32 %v291, 16
        %v325 = vrot.slane %v323, 4
        %v326 = vshll.u32 %v291, 16
        %v328 = vrot.slane %v326, 5
        %v329 = vor.u32 %v325, %v328
        %v330 = vrot.slane %v329, 4
        %v332 = vshll.u32 %v292, 16
        %v334 = vrot.slane %v332, 5
        %v335 = vsel %vm297, %v330, %v334
        %v336 = vshrl.u32 %v292, 16
        %v338 = vrot.slane %v336, 4
        %v339 = vor.u32 %v338, %v334
        %v340 = vrot.slane %v339, 4
        %v342 = vshll.u32 %v293, 16
        %v344 = vrot.slane %v342, 5
        %v345 = vsel %vm297, %v340, %v344
        %v346 = vld [vmem:[%s273] sm:$0xc]
        %v347 = vunpack.c.l.b16 %v311
        %v348 = vunpack.c.l.b16 %v321
        %v349 = vunpack.c.l.b16 %v335
        %v350 = vunpack.c.l.b16 %v345
        %v351 = vpack.c.b16 %v348, %v347
        %v352 = vpack.c.b16 %v350, %v349
        %v354 = vunpack.c.l.b16 %v346
        %v355 = vpack.c.b16 %v354, %v354
        %v356 = vrot.slane %v355, 2
        %vm357 = vcmask 31744
        %v359 = vsel %vm357, %v351, 0
        %v362 = vsel %vm357, %v352, 0
        %vm364 = vcmask 1041408
        %v366 = vsel %vm364, %v356, 0
        %368 = vmatprep.subr.bf16.mxu0 0
        %369 = vmatpush1.bf16.msra.mxu0 %v366
        %370 = vmatprep.subr.bf16.mxu0 0
        %371 = vmatpush1.bf16.msra.mxu0 0
        %372 = vmatprep.subr.bf16.mxu0 0
        %373 = vmatpush1.bf16.msra.mxu0 0
        %374 = vmatprep.subr.bf16.mxu0 0
        %375 = vmatpush1.bf16.msra.mxu0 0
        %376 = vmatprep.subr.bf16.mxu0 0
        %377 = vmatpush1.bf16.msra.mxu0 0
        %378 = vmatprep.subr.bf16.mxu0 0
        %379 = vmatpush1.bf16.msra.mxu0 0
        %380 = vmatprep.subr.bf16.mxu0 0
        %381 = vmatpush1.bf16.msra.mxu0 0
        %382 = vmatprep.subr.bf16.mxu0 0
        %383 = vmatpush1.bf16.msra.mxu0 0
        %384 = vmatprep.subr.bf16.mxu0 0
        %385 = vmatpush1.bf16.msra.mxu0 0
        %386 = vmatprep.subr.bf16.mxu0 0
        %387 = vmatpush1.bf16.msra.mxu0 0
        %388 = vmatprep.subr.bf16.mxu0 0
        %389 = vmatpush1.bf16.msra.mxu0 0
        %390 = vmatprep.subr.bf16.mxu0 0
        %391 = vmatpush1.bf16.msra.mxu0 0
        %392 = vmatprep.subr.bf16.mxu0 0
        %393 = vmatpush1.bf16.msra.mxu0 0
        %394 = vmatprep.subr.bf16.mxu0 0
        %395 = vmatpush1.bf16.msra.mxu0 0
        %396 = vmatprep.subr.bf16.mxu0 0
        %397 = vmatpush1.bf16.msra.mxu0 0
        %398 = vmatprep.subr.bf16.mxu0 0
        %399 = vmatpush1.bf16.msra.mxu0 0
        %400 = vmatprep.mubr.bf16.mxu0 0
        %401 = vmatmul.mubr.bf16.gmra.mrb[0].mxu0 %v359
        %v402 = vpop.f32.mrb[0].mxu0
        %v403 = vadd.f32 0.0, %v402
        %v404 = vpop.f32.mrb[0].mxu0
        %v405 = vpop.f32.mrb[0].mxu0
        %v406 = vadd.f32 0.0, %v405
        %v407 = vpop.f32.mrb[0].mxu0
        %408 = vmatprep.mubr.bf16.mxu0 0
        %409 = vmatmul.mubr.bf16.gmra.mrb[0].mxu0 %v362
        %v410 = vpop.f32.mrb[0].mxu0
        %v411 = vadd.f32 0.0, %v410
        %v412 = vpop.f32.mrb[0].mxu0
        %v413 = vpop.f32.mrb[0].mxu0
        %v414 = vadd.f32 0.0, %v413
        %v415 = vpop.f32.mrb[0].mxu0
        %416 = vdwg.mxu0
        %v421 = vunpack.c.l.b16 %v288
        %v422 = vunpack.c.l.b16 %v289
        %v423 = vunpack.c.l.b16 %v291
        %v424 = vunpack.c.l.b16 %v292
        %v425 = vpack.c.b16 %v422, %v421
        %v426 = vpack.c.b16 %v424, %v423
        %v428 = vsel %vm357, %v425, 0
        %v431 = vsel %vm357, %v426, 0
        %v434 = vsel %vm364, %v294, 0
        %436 = vmatprep.subr.bf16.mxu0 0
        %437 = vmatpush1.bf16.msra.mxu0 %v434
        %438 = vmatprep.subr.bf16.mxu0 0
        %439 = vmatpush1.bf16.msra.mxu0 0
        %440 = vmatprep.subr.bf16.mxu0 0
        %441 = vmatpush1.bf16.msra.mxu0 0
        %442 = vmatprep.subr.bf16.mxu0 0
        %443 = vmatpush1.bf16.msra.mxu0 0
        %444 = vmatprep.subr.bf16.mxu0 0
        %445 = vmatpush1.bf16.msra.mxu0 0
        %446 = vmatprep.subr.bf16.mxu0 0
        %447 = vmatpush1.bf16.msra.mxu0 0
        %448 = vmatprep.subr.bf16.mxu0 0
        %449 = vmatpush1.bf16.msra.mxu0 0
        %450 = vmatprep.subr.bf16.mxu0 0
        %451 = vmatpush1.bf16.msra.mxu0 0
        %452 = vmatprep.subr.bf16.mxu0 0
        %453 = vmatpush1.bf16.msra.mxu0 0
        %454 = vmatprep.subr.bf16.mxu0 0
        %455 = vmatpush1.bf16.msra.mxu0 0
        %456 = vmatprep.subr.bf16.mxu0 0
        %457 = vmatpush1.bf16.msra.mxu0 0
        %458 = vmatprep.subr.bf16.mxu0 0
        %459 = vmatpush1.bf16.msra.mxu0 0
        %460 = vmatprep.subr.bf16.mxu0 0
        %461 = vmatpush1.bf16.msra.mxu0 0
        %462 = vmatprep.subr.bf16.mxu0 0
        %463 = vmatpush1.bf16.msra.mxu0 0
        %464 = vmatprep.subr.bf16.mxu0 0
        %465 = vmatpush1.bf16.msra.mxu0 0
        %466 = vmatprep.subr.bf16.mxu0 0
        %467 = vmatpush1.bf16.msra.mxu0 0
        %468 = vmatprep.mubr.bf16.mxu0 0
        %469 = vmatmul.mubr.bf16.gmra.mrb[0].mxu0 %v428
        %v470 = vpop.f32.mrb[0].mxu0
        %v471 = vadd.f32 %v403, %v470
        %v472 = vpop.f32.mrb[0].mxu0
        %v473 = vpop.f32.mrb[0].mxu0
        %v474 = vadd.f32 %v406, %v473
        %v475 = vpop.f32.mrb[0].mxu0
        %476 = vmatprep.mubr.bf16.mxu0 0
        %477 = vmatmul.mubr.bf16.gmra.mrb[0].mxu0 %v431
        %v478 = vpop.f32.mrb[0].mxu0
        %v479 = vadd.f32 %v411, %v478
        %v480 = vpop.f32.mrb[0].mxu0
        %v481 = vpop.f32.mrb[0].mxu0
        %v482 = vadd.f32 %v414, %v481
        %v483 = vpop.f32.mrb[0].mxu0
        %484 = vdwg.mxu0
        %vm487 = vcmask 1042432
        %vm488 = vcmask 1046532
        %vm489 = vmor %vm487, %vm488
        %v490 = vrot.slane %v288, 5
        %v491 = vrot.slane %v490, 4
        %v492 = vrot.slane %v289, 5
        %v493 = vsel %vm489, %v491, %v492
        %v494 = vrot.slane %v492, 4
        %v495 = vrot.slane %v290, 5
        %v496 = vsel %vm489, %v494, %v495
        %v497 = vrot.slane %v291, 5
        %v498 = vrot.slane %v497, 4
        %v499 = vrot.slane %v292, 5
        %v500 = vsel %vm489, %v498, %v499
        %v501 = vrot.slane %v499, 4
        %v502 = vrot.slane %v293, 5
        %v503 = vsel %vm489, %v501, %v502
        %v504 = vld [vmem:[%s273 + $0x4] sm:$0x3]
        %v505 = vunpack.c.l.b16 %v493
        %v506 = vunpack.c.l.b16 %v496
        %v507 = vunpack.c.l.b16 %v500
        %v508 = vunpack.c.l.b16 %v503
        %v509 = vpack.c.b16 %v506, %v505
        %v510 = vpack.c.b16 %v508, %v507
        %v512 = vsel %vm357, %v509, 0
        %v515 = vsel %vm357, %v510, 0
        %v518 = vsel %vm364, %v504, 0
        %520 = vmatprep.subr.bf16.mxu0 0
        %521 = vmatpush1.bf16.msra.mxu0 %v518
        %522 = vmatprep.subr.bf16.mxu0 0
        %523 = vmatpush1.bf16.msra.mxu0 0
        %524 = vmatprep.subr.bf16.mxu0 0
        %525 = vmatpush1.bf16.msra.mxu0 0
        %526 = vmatprep.subr.bf16.mxu0 0
        %527 = vmatpush1.bf16.msra.mxu0 0
        %528 = vmatprep.subr.bf16.mxu0 0
        %529 = vmatpush1.bf16.msra.mxu0 0
        %530 = vmatprep.subr.bf16.mxu0 0
        %531 = vmatpush1.bf16.msra.mxu0 0
        %532 = vmatprep.subr.bf16.mxu0 0
        %533 = vmatpush1.bf16.msra.mxu0 0
        %534 = vmatprep.subr.bf16.mxu0 0
        %535 = vmatpush1.bf16.msra.mxu0 0
        %536 = vmatprep.subr.bf16.mxu0 0
        %537 = vmatpush1.bf16.msra.mxu0 0
        %538 = vmatprep.subr.bf16.mxu0 0
        %539 = vmatpush1.bf16.msra.mxu0 0
        %540 = vmatprep.subr.bf16.mxu0 0
        %541 = vmatpush1.bf16.msra.mxu0 0
        %542 = vmatprep.subr.bf16.mxu0 0
        %543 = vmatpush1.bf16.msra.mxu0 0
        %544 = vmatprep.subr.bf16.mxu0 0
        %545 = vmatpush1.bf16.msra.mxu0 0
        %546 = vmatprep.subr.bf16.mxu0 0
        %547 = vmatpush1.bf16.msra.mxu0 0
        %548 = vmatprep.subr.bf16.mxu0 0
        %549 = vmatpush1.bf16.msra.mxu0 0
        %550 = vmatprep.subr.bf16.mxu0 0
        %551 = vmatpush1.bf16.msra.mxu0 0
        %552 = vmatprep.mubr.bf16.mxu0 0
        %553 = vmatmul.mubr.bf16.gmra.mrb[0].mxu0 %v512
        %v554 = vpop.f32.mrb[0].mxu0
        %v555 = vadd.f32 0.0, %v554
        %v556 = vpop.f32.mrb[0].mxu0
        %v557 = vpop.f32.mrb[0].mxu0
        %v558 = vadd.f32 0.0, %v557
        %v559 = vpop.f32.mrb[0].mxu0
        %560 = vmatprep.mubr.bf16.mxu0 0
        %561 = vmatmul.mubr.bf16.gmra.mrb[0].mxu0 %v515
        %v562 = vpop.f32.mrb[0].mxu0
        %v563 = vadd.f32 0.0, %v562
        %v564 = vpop.f32.mrb[0].mxu0
        %v565 = vpop.f32.mrb[0].mxu0
        %v566 = vadd.f32 0.0, %v565
        %v567 = vpop.f32.mrb[0].mxu0
        %568 = vdwg.mxu0
        %v569 = vadd.f32 %v471, %v555
        %v570 = vadd.f32 %v474, %v558
        %v571 = vadd.f32 %v479, %v563
        %v572 = vadd.f32 %v482, %v566
        %vm573 = vsmask.f32 2304
        %vm574 = vsmask.f32 6416
        %vm575 = vmor %vm573, %vm574
        %v576 = vrot.slane %v299, 5
        %v577 = vrot.slane %v302, 6
        %v578 = vor.u32 %v576, %v577
        %v579 = vrot.slane %v578, 4
        %v580 = vrot.slane %v312, 5
        %v581 = vrot.slane %v308, 6
        %v582 = vor.u32 %v580, %v581
        %v583 = vsel %vm575, %v579, %v582
        %v584 = vrot.slane %v582, 4
        %v585 = vshrl.u32 %v290, 16
        %v587 = vrot.slane %v585, 5
        %v588 = vrot.slane %v318, 6
        %v589 = vor.u32 %v587, %v588
        %v590 = vsel %vm575, %v584, %v589
        %v591 = vrot.slane %v323, 5
        %v592 = vrot.slane %v326, 6
        %v593 = vor.u32 %v591, %v592
        %v594 = vrot.slane %v593, 4
        %v595 = vrot.slane %v336, 5
        %v596 = vrot.slane %v332, 6
        %v597 = vor.u32 %v595, %v596
        %v598 = vsel %vm575, %v594, %v597
        %v599 = vrot.slane %v597, 4
        %v600 = vshrl.u32 %v293, 16
        %v602 = vrot.slane %v600, 5
        %v603 = vrot.slane %v342, 6
        %v604 = vor.u32 %v602, %v603
        %v605 = vsel %vm575, %v599, %v604
        %v606 = vld [vmem:[%s273 + $0x4] sm:$0xc]
        %v607 = vunpack.c.l.b16 %v583
        %v608 = vunpack.c.l.b16 %v590
        %v609 = vunpack.c.l.b16 %v598
        %v610 = vunpack.c.l.b16 %v605
        %v611 = vpack.c.b16 %v608, %v607
        %v612 = vpack.c.b16 %v610, %v609
        %v614 = vunpack.c.l.b16 %v606
        %v615 = vpack.c.b16 %v614, %v614
        %v616 = vrot.slane %v615, 2
        %v618 = vsel %vm357, %v611, 0
        %v621 = vsel %vm357, %v612, 0
        %v624 = vsel %vm364, %v616, 0
        %626 = vmatprep.subr.bf16.mxu0 0
        %627 = vmatpush1.bf16.msra.mxu0 %v624
        %628 = vmatprep.subr.bf16.mxu0 0
        %629 = vmatpush1.bf16.msra.mxu0 0
        %630 = vmatprep.subr.bf16.mxu0 0
        %631 = vmatpush1.bf16.msra.mxu0 0
        %632 = vmatprep.subr.bf16.mxu0 0
        %633 = vmatpush1.bf16.msra.mxu0 0
        %634 = vmatprep.subr.bf16.mxu0 0
        %635 = vmatpush1.bf16.msra.mxu0 0
        %636 = vmatprep.subr.bf16.mxu0 0
        %637 = vmatpush1.bf16.msra.mxu0 0
        %638 = vmatprep.subr.bf16.mxu0 0
        %639 = vmatpush1.bf16.msra.mxu0 0
        %640 = vmatprep.subr.bf16.mxu0 0
        %641 = vmatpush1.bf16.msra.mxu0 0
        %642 = vmatprep.subr.bf16.mxu0 0
        %643 = vmatpush1.bf16.msra.mxu0 0
        %644 = vmatprep.subr.bf16.mxu0 0
        %645 = vmatpush1.bf16.msra.mxu0 0
        %646 = vmatprep.subr.bf16.mxu0 0
        %647 = vmatpush1.bf16.msra.mxu0 0
        %648 = vmatprep.subr.bf16.mxu0 0
        %649 = vmatpush1.bf16.msra.mxu0 0
        %650 = vmatprep.subr.bf16.mxu0 0
        %651 = vmatpush1.bf16.msra.mxu0 0
        %652 = vmatprep.subr.bf16.mxu0 0
        %653 = vmatpush1.bf16.msra.mxu0 0
        %654 = vmatprep.subr.bf16.mxu0 0
        %655 = vmatpush1.bf16.msra.mxu0 0
        %656 = vmatprep.subr.bf16.mxu0 0
        %657 = vmatpush1.bf16.msra.mxu0 0
        %658 = vmatprep.mubr.bf16.mxu0 0
        %659 = vmatmul.mubr.bf16.gmra.mrb[0].mxu0 %v618
        %v660 = vpop.f32.mrb[0].mxu0
        %v661 = vadd.f32 0.0, %v660
        %v662 = vpop.f32.mrb[0].mxu0
        %v663 = vpop.f32.mrb[0].mxu0
        %v664 = vadd.f32 0.0, %v663
        %v665 = vpop.f32.mrb[0].mxu0
        %666 = vmatprep.mubr.bf16.mxu0 0
        %667 = vmatmul.mubr.bf16.gmra.mrb[0].mxu0 %v621
        %v668 = vpop.f32.mrb[0].mxu0
        %v669 = vadd.f32 0.0, %v668
        %v670 = vpop.f32.mrb[0].mxu0
        %v671 = vpop.f32.mrb[0].mxu0
        %v672 = vadd.f32 0.0, %v671
        %v673 = vpop.f32.mrb[0].mxu0
        %674 = vdwg.mxu0
        %v675 = vadd.f32 %v569, %v661
        %v676 = vadd.f32 %v570, %v664
        %v677 = vadd.f32 %v571, %v669
        %v678 = vadd.f32 %v572, %v672
        %vm679 = vcmask 1041408
        %vm680 = vcmask 1045508
        %vm681 = vmor %vm679, %vm680
        %v682 = vrot.slane %v288, 6
        %v683 = vrot.slane %v682, 4
        %v684 = vrot.slane %v289, 6
        %v685 = vsel %vm681, %v683, %v684
        %v686 = vrot.slane %v684, 4
        %v687 = vrot.slane %v290, 6
        %v688 = vsel %vm681, %v686, %v687
        %v689 = vrot.slane %v291, 6
        %v690 = vrot.slane %v689, 4
        %v691 = vrot.slane %v292, 6
        %v692 = vsel %vm681, %v690, %v691
        %v693 = vrot.slane %v691, 4
        %v694 = vrot.slane %v293, 6
        %v695 = vsel %vm681, %v693, %v694
        %v696 = vld [vmem:[%s273 + $0x8] sm:$0x3]
        %v697 = vunpack.c.l.b16 %v685
        %v698 = vunpack.c.l.b16 %v688
        %v699 = vunpack.c.l.b16 %v692
        %v700 = vunpack.c.l.b16 %v695
        %v701 = vpack.c.b16 %v698, %v697
        %v702 = vpack.c.b16 %v700, %v699
        %v704 = vsel %vm357, %v701, 0
        %v707 = vsel %vm357, %v702, 0
        %v710 = vsel %vm364, %v696, 0
        %712 = vmatprep.subr.bf16.mxu0 0
        %713 = vmatpush1.bf16.msra.mxu0 %v710
        %714 = vmatprep.subr.bf16.mxu0 0
        %715 = vmatpush1.bf16.msra.mxu0 0
        %716 = vmatprep.subr.bf16.mxu0 0
        %717 = vmatpush1.bf16.msra.mxu0 0
        %718 = vmatprep.subr.bf16.mxu0 0
        %719 = vmatpush1.bf16.msra.mxu0 0
        %720 = vmatprep.subr.bf16.mxu0 0
        %721 = vmatpush1.bf16.msra.mxu0 0
        %722 = vmatprep.subr.bf16.mxu0 0
        %723 = vmatpush1.bf16.msra.mxu0 0
        %724 = vmatprep.subr.bf16.mxu0 0
        %725 = vmatpush1.bf16.msra.mxu0 0
        %726 = vmatprep.subr.bf16.mxu0 0
        %727 = vmatpush1.bf16.msra.mxu0 0
        %728 = vmatprep.subr.bf16.mxu0 0
        %729 = vmatpush1.bf16.msra.mxu0 0
        %730 = vmatprep.subr.bf16.mxu0 0
        %731 = vmatpush1.bf16.msra.mxu0 0
        %732 = vmatprep.subr.bf16.mxu0 0
        %733 = vmatpush1.bf16.msra.mxu0 0
        %734 = vmatprep.subr.bf16.mxu0 0
        %735 = vmatpush1.bf16.msra.mxu0 0
        %736 = vmatprep.subr.bf16.mxu0 0
        %737 = vmatpush1.bf16.msra.mxu0 0
        %738 = vmatprep.subr.bf16.mxu0 0
        %739 = vmatpush1.bf16.msra.mxu0 0
        %740 = vmatprep.subr.bf16.mxu0 0
        %741 = vmatpush1.bf16.msra.mxu0 0
        %742 = vmatprep.subr.bf16.mxu0 0
        %743 = vmatpush1.bf16.msra.mxu0 0
        %744 = vmatprep.mubr.bf16.mxu0 0
        %745 = vmatmul.mubr.bf16.gmra.mrb[0].mxu0 %v704
        %v746 = vpop.f32.mrb[0].mxu0
        %v747 = vadd.f32 0.0, %v746
        %v748 = vpop.f32.mrb[0].mxu0
        %v749 = vpop.f32.mrb[0].mxu0
        %v750 = vadd.f32 0.0, %v749
        %v751 = vpop.f32.mrb[0].mxu0
        %752 = vmatprep.mubr.bf16.mxu0 0
        %753 = vmatmul.mubr.bf16.gmra.mrb[0].mxu0 %v707
        %v754 = vpop.f32.mrb[0].mxu0
        %v755 = vadd.f32 0.0, %v754
        %v756 = vpop.f32.mrb[0].mxu0
        %v757 = vpop.f32.mrb[0].mxu0
        %v758 = vadd.f32 0.0, %v757
        %v759 = vpop.f32.mrb[0].mxu0
        %760 = vdwg.mxu0
        %v761 = vadd.f32 %v675, %v747
        %v762 = vadd.f32 %v676, %v750
        %v763 = vadd.f32 %v677, %v755
        %v764 = vadd.f32 %v678, %v758
        %v765 = vld [vmem:[#allocation2] sm:$0xff]
        %v766 = vld [vmem:[#allocation2 + $0x8] sm:$0xff]
        %v767 = vld [vmem:[#allocation2 + $0x10] sm:$0xff]
        %v768 = vld [vmem:[#allocation2 + $0x18] sm:$0xff]
        %v769 = vadd.f32 %v765, %v761
        %v770 = vadd.f32 %v766, %v762
        %v771 = vadd.f32 %v767, %v763
        %v772 = vadd.f32 %v768, %v764
        %vm773 = vcmask 523264
        %774 = vst.msk [vmem:[#allocation2] sm:$0xff] %vm773, %v769
        %775 = vst.msk [vmem:[#allocation2 + $0x8] sm:$0xff] %vm773, %v770
        %776 = vst.msk [vmem:[#allocation2 + $0x10] sm:$0xff] %vm773, %v771
        %777 = vst.msk [vmem:[#allocation2 + $0x18] sm:$0xff] %vm773, %v772
        %p778 = scmp.eq.s32.totalorder %s23, 4
        // Predicated region
        $region74: #{tpu_custom_call.1} parent=64 // pred_check
          %p779 = pneg %p778
        $region75: #{tpu_custom_call.1} parent=64 // pred_check_branch
          %781 = sbr.rel (%p779) target = $region77
        $region76: #{tpu_custom_call.1} parent=64 // pred_region
          %v782 = vld [vmem:[#allocation2] sm:$0xff]
          %v783 = vld [vmem:[#allocation2 + $0x8] sm:$0xff]
          %v784 = vld [vmem:[#allocation2 + $0x10] sm:$0xff]
          %v785 = vld [vmem:[#allocation2 + $0x18] sm:$0xff]
          %v786 = vpack.c.bf16 %v783, %v782
          %v787 = vpack.c.bf16 %v785, %v784
          %v790 = vunpack.c.l.b16 %v786
          %v791 = vunpack.c.h.b16 %v786
          %v792 = vunpack.c.l.b16 %v787
          %v793 = vunpack.c.h.b16 %v787
          %v794 = vpack.c.b16 %v790, %v790
          %v795 = vpack.c.b16 %v791, %v791
          %v796 = vpack.c.b16 %v792, %v792
          %v797 = vpack.c.b16 %v793, %v793
          %vm802 = vcmask 519168
          %803 = vst.msk [vmem:[%s261] sm:$0xf] %vm802, %v794
          %804 = vst.msk [vmem:[%s261 + $0x4] sm:$0xf] %vm802, %v795
          %805 = vst.msk [vmem:[%s261 + $0x8] sm:$0xf] %vm802, %v796
          %806 = vst.msk [vmem:[%s261 + $0xc] sm:$0xf] %vm802, %v797
          %v807 = vsel %vm773, %v782, 0.0
          %v808 = vsel %vm773, %v783, 0.0
          %v809 = vadd.f32 %v807, %v808
          %v810 = vsel %vm773, %v784, 0.0
          %v811 = vadd.f32 %v809, %v810
          %v812 = vsel %vm773, %v785, 0.0
          %v813 = vadd.f32 %v811, %v812
          %v814 = vrot.slane %v813, 4
          %v815 = vadd.f32 %v813, %v814
          %v816 = vrot.slane %v815, 2
          %v817 = vadd.f32 %v815, %v816
          %v818 = vrot.slane %v817, 1
          %v819 = vadd.f32 %v817, %v818
          %v820 = vmul.f32 %v782, %v782
          %v821 = vmul.f32 %v783, %v783
          %v822 = vmul.f32 %v784, %v784
          %v823 = vmul.f32 %v785, %v785
          %v824 = vsel %vm773, %v820, 0.0
          %v825 = vsel %vm773, %v821, 0.0
          %v826 = vadd.f32 %v824, %v825
          %v827 = vsel %vm773, %v822, 0.0
          %v828 = vadd.f32 %v826, %v827
          %v829 = vsel %vm773, %v823, 0.0
          %v830 = vadd.f32 %v828, %v829
          %v831 = vrot.slane %v830, 4
          %v832 = vadd.f32 %v830, %v831
          %v833 = vrot.slane %v832, 2
          %v834 = vadd.f32 %v832, %v833
          %v835 = vrot.slane %v834, 1
          %v836 = vadd.f32 %v834, %v835
          %v837 = vlaneseq
          %v838 = vshrl.u32 %v837, 7
          %vm839 = vcmp.eq.s32.totalorder %v838, 0
          %vm840 = vcmp.eq.s32.totalorder %v838, 1
          %v841 = vsel %vm840, %v836, 0.0
          %v842 = vsel %vm839, %v819, %v841
          %843 = vst.msk [vmem:[%s277] sm:$0xff] %vm773, %v842
        $region77: #{tpu_custom_call.1} parent=64 // pred_fallthru
          _
        %s844 = sand.u32 %s92, 1
        %s845 = scalar_lea.sflag [#allocation5], %s844
        %s846 = sand.u32 %s92, 1
        %s847 = smul.addr %s846, 16
        %s848 = scalar_lea.vmem [#allocation4], %s847
        %p849 = scmp.lt.s32.totalorder %s22, 15
        %s850 = scalar_select %p849, %s22, 15
        %s851 = smul.addr %s850, 8
        %s852 = scalar_lea.vmem %s3, %s851
        // Predicated region
        $region78: #{tpu_custom_call.1} parent=64 // pred_check
          %p853 = pneg %p102
        $region79: #{tpu_custom_call.1} parent=64 // pred_check_branch
          %855 = sbr.rel (%p853) target = $region81
        $region80: #{tpu_custom_call.1} parent=64 // pred_region
          #allocation7 [shape = 'u32[6]{0}', space=smem, size = 0x18, scoped, tag = 'DMA stride descriptor']
          %s857 = ssub.s32 256, 256
          %858 = vsyncadd %s845, %s857
          %s859 = smul.addr %s22, 2
          %s860 = smul.addr %s859, 64
          %s861 = scalar_lea.hbm %s2, %s860
          %s863 = sshll.u32 1, 14
          %s864 = sxor.u32 4294967295, %s863
          %s867 = sshll.u32 7, 18
          %s868 = sxor.u32 4294967295, %s867
          %s869 = sand.u32 0, %s868
          %s871 = sor.u32 %s869, 0
          %s873 = sshll.u32 3, 24
          %s874 = sxor.u32 4294967295, %s873
          %s875 = sand.u32 %s871, %s874
          %s877 = sor.u32 %s875, 0
          %s878 = sshll.u32 %s848, 4
          %s879 = int_to_ptr.vmem [resolvable:$true] %s878
          %885 = sst [smem:[#allocation7]] 128
          %s886 = scalar_lea.smem [#allocation7], 1
          %887 = sst [smem:[%s886]] 2048
          %s888 = scalar_lea.smem [#allocation7], 2
          %889 = sst [smem:[%s888]] 2
          %s890 = scalar_lea.smem [#allocation7], 3
          %891 = sst [smem:[%s890]] 64
          %s892 = scalar_lea.smem [#allocation7], 4
          %893 = sst [smem:[%s892]] 64
          %s894 = scalar_lea.smem [#allocation7], 5
          %895 = sst [smem:[%s894]] 4
          %897 = dma.general %s879, 256, %s861, %s845, [#allocation6], [#allocation7], %s877, 0
        $region81: #{tpu_custom_call.1} parent=64 // pred_fallthru
          _
        // Predicated region
        $region82: #{tpu_custom_call.1} parent=64 // pred_check
          %p898 = pneg %p128
        $region83: #{tpu_custom_call.1} parent=64 // pred_check_branch
          %900 = sbr.rel (%p898) target = $region85
        $region84: #{tpu_custom_call.1} parent=64 // pred_region
          _
        $region85: #{tpu_custom_call.1} parent=64 // pred_fallthru
          _
      $region65: #{tpu_custom_call.1} parent=5 // pred_fallthru
        _
      %p901 = scmp.le.s32.totalorder 2, %s13
      // Predicated region
      $region86: #{tpu_custom_call.1} parent=5 // pred_check
        %p902 = pneg %p901
      $region87: #{tpu_custom_call.1} parent=5 // pred_check_branch
        %904 = sbr.rel (%p902) target = $region89
      $region88: #{tpu_custom_call.1} parent=5 // pred_region
        %s905 = ssub.s32 %s13, 2
        // Predicated region
        $region90: #{tpu_custom_call.1} parent=88 // pred_check
          %p906 = pneg %p108
        $region91: #{tpu_custom_call.1} parent=88 // pred_check_branch
          %908 = sbr.rel (%p906) target = $region93
        $region92: #{tpu_custom_call.1} parent=88 // pred_region
          %s909 = sand.u32 %s93, 1
          %s910 = scalar_lea.sflag [#allocation5], %s909
          %s911 = sand.u32 %s93, 1
          %s912 = smul.addr %s911, 16
          %s913 = scalar_lea.vmem [#allocation4], %s912
          %914 = dma.done %s910, 256
        $region93: #{tpu_custom_call.1} parent=88 // pred_fallthru
          _
        // Predicated region
        $region94: #{tpu_custom_call.1} parent=88 // pred_check
          %p915 = pneg %p134
        $region95: #{tpu_custom_call.1} parent=88 // pred_check_branch
          %917 = sbr.rel (%p915) target = $region97
        $region96: #{tpu_custom_call.1} parent=88 // pred_region
          %p918 = scmp.lt.s32.totalorder %s24, 15
          %s919 = scalar_select %p918, %s24, 15
          %s920 = smul.addr %s919, 8
          %s921 = scalar_lea.vmem %s3, %s920
        $region97: #{tpu_custom_call.1} parent=88 // pred_fallthru
          _
      $region89: #{tpu_custom_call.1} parent=5 // pred_fallthru
        _
    $region6: #{tpu_custom_call.1} parent=1 // loop_footer
      %s17 = sadd.s32 1, %s13
    $region7: #{tpu_custom_call.1} parent=1 // loop_footer_branch
      %12 = sbr.rel target = $region3
    $region8: #{tpu_custom_call.1} parent=1 // loop_exit
      _
    %922 = vsyncpa [#allocation5], 1
    %s923 = scalar_lea.sflag [#allocation5], 1
    %924 = vsyncpa %s923, 1

</llo_original>
